<compile_context>
chip_gen: v5e
topology: v5e:2x2
jax: 0.10.0
libtpu: 0.0.40
codegen_flags: <defaults>
</compile_context>

<pallas_src>
import functools

import numpy as np
import jax
import jax.numpy as jnp
from jax import lax
from jax.experimental import pallas as pl
from jax.experimental.pallas import tpu as pltpu

C = 10      # channels fixed by the module (Conv2d(10, 10, 3))
K = 3       # kernel size
PAD = 1
CENTER = (K // 2) * K + (K // 2)   # tap index of (kh=1, kw=1) == 4


def _make_tap_masks(H, W, bt):
    """(9, C, bt*H*W) f32. masks[t, :, q] == 1 iff the per-image position
    (q mod HW) has a valid in-image source pixel for tap t = 3*kh + kw.
    Implements conv zero-padding in-register and also zeroes lanes that a roll
    would pull across image boundaries when bt images share the lane axis."""
    HW = H * W
    pos = np.arange(HW)
    row, col = pos // W, pos % W
    m = np.zeros((K * K, HW), np.float32)
    for kh in range(K):
        for kw in range(K):
            dh, dw = kh - PAD, kw - PAD
            ok = ((row + dh >= 0) & (row + dh < H) &
                  (col + dw >= 0) & (col + dw < W))
            m[kh * K + kw] = ok.astype(np.float32)
    m = np.tile(m, (1, bt))                                        # (9, bt*HW)
    # Pre-broadcast over channels so the kernel never re-emits broadcast_in_dim.
    m = np.broadcast_to(m[:, None, :], (K * K, C, bt * HW)).copy()
    return jnp.asarray(m)


def fused_kernel(x_ref, w1_ref, w2_ref, m_ref, o_ref, *, H, W):
    """One grid step: bt images lane-concatenated into a (C, bt*HW) slab.

    conv3x3(src) = W_full (C, 9C+1) @ [9 rolled/masked slabs ; ones] (9C+1, L)
    Residual is pre-folded into conv1's center tap, '+1' into conv2's bias.
    """
    bt, _, HW = x_ref.shape
    L = bt * HW

    # Lane-concatenate the bt images (HW % 128 == 0 -> lane-tile aligned, cheap).
    if bt == 1:
        slab = x_ref[0]
    else:
        slab = jnp.concatenate([x_ref[b] for b in range(bt)], axis=1)   # (C, L)

    ones_row = jnp.ones((1, L), jnp.float32)     # bias row (built once, reused)

    def conv3x3(src, w_ref):
        pieces = []
        for kh in range(K):
            for kw in range(K):
                d = (kh - PAD) * W + (kw - PAD)
                t = kh * K + kw
                if d == 0:
                    pieces.append(src)           # center tap: no shift, never masked
                else:
                    # Lane p of the rolled slab holds src[p + d]; lanes whose
                    # source pixel is outside its own image are zeroed by the
                    # mask.  (Multiply-by-mask assumes finite inputs; switch to
                    # jnp.where if Inf/NaN inputs are possible.)
                    pieces.append(pltpu.roll(src, (-d) % L, 1) * m_ref[t])
        pieces.append(ones_row)                  # bias handled inside the MXU
        rhs = jnp.concatenate(pieces, axis=0)    # (9*C + 1, L)
        return jnp.dot(w_ref[...], rhs, preferred_element_type=jnp.float32)

    v3 = jnp.maximum(conv3x3(slab, w1_ref), 0.0)   # conv1 + b1 + residual, relu
    out = jnp.maximum(conv3x3(v3, w2_ref), 0.0)    # conv2 + (b2 + 1), relu

    for b in range(bt):                            # lane-tile aligned split back
        o_ref[b] = out[:, b * HW:(b + 1) * HW]


def _stack_weights(w_oihw, bias):
    """OIHW (C,C,3,3) -> (C, 9*C+1): per-tap (C_out, C_in) blocks in tap order
    t = 3*kh + kw, bias as the last column (paired with the in-kernel ones row)."""
    w_stacked = jnp.transpose(w_oihw, (0, 2, 3, 1)).reshape(C, K * K * C)
    return jnp.concatenate([w_stacked, bias.reshape(C, 1)], axis=1)


def _pick_block_batch(N):
    # v7x has 2 TensorCores/chip -> keep >=2 'parallel' grid steps so both cores
    # get work; single-TC v5e/v6e -> a single step minimizes the ~0.35us fixed
    # per-step overhead that dominates this tiny kernel.
    two_tc = False
    try:
        two_tc = "v7" in jax.devices()[0].device_kind.lower()
    except Exception:
        pass
    if two_tc and N % 2 == 0:
        return max(1, N // 2)
    return N


@functools.partial(jax.jit, static_argnames=("block_batch",))
def model_forward(x_nchw, w1_oihw, b1, w2_oihw, b2, *, block_batch=None):
    """x_nchw: (N, C, H, W) f32; weights OIHW (C, C, 3, 3); biases (C,)."""
    N, Cin, H, W = x_nchw.shape
    assert Cin == C
    HW = H * W
    bt = block_batch if block_batch is not None else _pick_block_batch(N)
    bt = max(1, min(bt, N))
    assert N % bt == 0
    grid_n = N // bt

    # Free (bitcast) reshape -- no transpose, no HBM pad pass.
    x_flat = x_nchw.reshape(N, C, HW)

    # Fold residual into conv1's center tap and '+1' into conv2's bias; biases
    # ride inside the stacked matmul via the in-kernel ones row.
    w1_full = _stack_weights(
        w1_oihw.at[:, :, PAD, PAD].add(jnp.eye(C, dtype=w1_oihw.dtype)), b1)
    w2_full = _stack_weights(w2_oihw, b2 + 1.0)
    masks = _make_tap_masks(H, W, bt)

    kernel = functools.partial(fused_kernel, H=H, W=W)

    out_flat = pl.pallas_call(
        kernel,
        out_shape=jax.ShapeDtypeStruct((N, C, HW), jnp.float32),
        grid_spec=pltpu.PrefetchScalarGridSpec(
            num_scalar_prefetch=0,
            grid=(grid_n,),
            in_specs=[
                pl.BlockSpec((bt, C, HW), lambda n: (n, 0, 0)),          # x
                pl.BlockSpec((C, K * K * C + 1), lambda n: (0, 0)),      # conv1 W|b
                pl.BlockSpec((C, K * K * C + 1), lambda n: (0, 0)),      # conv2 W|b
                pl.BlockSpec((K * K, C, bt * HW), lambda n: (0, 0, 0)),  # tap masks
            ],
            out_specs=pl.BlockSpec((bt, C, HW), lambda n: (n, 0, 0)),
        ),
        # Tiny working set here; for large N on v7x (64 MiB VMEM) keep
        # bt <= ~256 or raise vmem_limit_bytes via CompilerParams.
        compiler_params=pltpu.CompilerParams(
            dimension_semantics=("parallel",)),
    )(x_flat, w1_full, w2_full, masks)

    return out_flat.reshape(N, C, H, W)            # free reshape back to NCHW


def _reference(x_nchw, w1_oihw, b1, w2_oihw, b2):
    """Pure-JAX reference (lax conv, NCHW / OIHW) matching the PyTorch module."""
    def conv(inp, w, b):
        y = lax.conv_general_dilated(
            inp, w, window_strides=(1, 1), padding=((PAD, PAD), (PAD, PAD)),
            dimension_numbers=("NCHW", "OIHW", "NCHW"))
        return y + b.reshape(1, C, 1, 1)

    v1 = conv(x_nchw, w1_oihw, b1)
    v3 = jnp.maximum(v1 + x_nchw, 0.0)
    v4 = conv(v3, w2_oihw, b2)
    return jnp.maximum(1.0 + v4, 0.0)


if __name__ == "__main__":
    key = jax.random.PRNGKey(0)
    k_x, k_w1, k_b1, k_w2, k_b2 = jax.random.split(key, 5)

    # Small shapes consistent with the module (channels fixed at 10).
    N, H, W = 2, 16, 16
    x = jax.random.normal(k_x, (N, C, H, W), jnp.float32)

    # PyTorch-style init (fan_in = C*K*K), OIHW layout like nn.Conv2d.weight.
    fan_in = C * K * K
    bound = 1.0 / (fan_in ** 0.5)
    w1 = jax.random.uniform(k_w1, (C, C, K, K), jnp.float32, -bound, bound)
    b1 = jax.random.uniform(k_b1, (C,), jnp.float32, -bound, bound)
    w2 = jax.random.uniform(k_w2, (C, C, K, K), jnp.float32, -bound, bound)
    b2 = jax.random.uniform(k_b2, (C,), jnp.float32, -bound, bound)

    out = jax.block_until_ready(model_forward(x, w1, b1, w2, b2))
    ref = jax.block_until_ready(_reference(x, w1, b1, w2, b2))

    assert out.shape == (N, C, H, W)
    assert jnp.allclose(out, ref, rtol=1e-3, atol=1e-3), "mismatch vs reference"
    print("KERNEL_OK")
</pallas_src>

<mosaic_0001>
module attributes {stable_mosaic.version = 11 : i64} {
  func.func @fused_kernel(%arg0: i32, %arg1: memref<2x10x256xf32, #tpu.memory_space<vmem>>, %arg2: memref<10x91xf32, #tpu.memory_space<vmem>>, %arg3: memref<10x91xf32, #tpu.memory_space<vmem>>, %arg4: memref<9x10x512xf32, #tpu.memory_space<vmem>>, %arg5: memref<2x10x256xf32, #tpu.memory_space<vmem>>) attributes {dimension_semantics = [#tpu.dimension_semantics<parallel>], iteration_bounds = array<i64: 1>, scalar_prefetch = 0 : i64, scratch_operands = 0 : i64, tpu.core_type = #tpu.core_type<tc>, window_params = [{transform_indices = @transform_0, window_bounds = array<i64: 2, 10, 256>}, {pipeline_mode = #tpu.pipeline_mode<synchronous>, transform_indices = @transform_1, window_bounds = array<i64: 10, 91>}, {pipeline_mode = #tpu.pipeline_mode<synchronous>, transform_indices = @transform_2, window_bounds = array<i64: 10, 91>}, {pipeline_mode = #tpu.pipeline_mode<synchronous>, transform_indices = @transform_3, window_bounds = array<i64: 9, 10, 512>}, {transform_indices = @transform_4, window_bounds = array<i64: 2, 10, 256>}]} {
    %c0 = arith.constant 0 : index
    %c0_0 = arith.constant 0 : index
    %c0_1 = arith.constant 0 : index
    %0 = vector.load %arg1[%c0, %c0_0, %c0_1] : memref<2x10x256xf32, #tpu.memory_space<vmem>>, vector<1x10x256xf32>
    %1 = vector.shape_cast %0 : vector<1x10x256xf32> to vector<10x256xf32>
    %c1 = arith.constant 1 : index
    %c0_2 = arith.constant 0 : index
    %c0_3 = arith.constant 0 : index
    %2 = vector.load %arg1[%c1, %c0_2, %c0_3] : memref<2x10x256xf32, #tpu.memory_space<vmem>>, vector<1x10x256xf32>
    %3 = vector.shape_cast %2 : vector<1x10x256xf32> to vector<10x256xf32>
    %4 = tpu.concatenate %1, %3 in 1 : vector<10x256xf32>, vector<10x256xf32> -> vector<10x512xf32>
    %cst = arith.constant 1.000000e+00 : f32
    %5 = vector.broadcast %cst : f32 to vector<1x512xf32>
    %c17_i32 = arith.constant 17 : i32
    %6 = tpu.dynamic_rotate %4 by %c17_i32 dim 1 : vector<10x512xf32>, i32 -> vector<10x512xf32>
    %c0_4 = arith.constant 0 : index
    %c0_5 = arith.constant 0 : index
    %c0_6 = arith.constant 0 : index
    %7 = vector.load %arg4[%c0_4, %c0_5, %c0_6] : memref<9x10x512xf32, #tpu.memory_space<vmem>>, vector<1x10x512xf32>
    %8 = vector.shape_cast %7 : vector<1x10x512xf32> to vector<10x512xf32>
    %9 = arith.mulf %6, %8 : vector<10x512xf32>
    %c16_i32 = arith.constant 16 : i32
    %10 = tpu.dynamic_rotate %4 by %c16_i32 dim 1 : vector<10x512xf32>, i32 -> vector<10x512xf32>
    %c1_7 = arith.constant 1 : index
    %c0_8 = arith.constant 0 : index
    %c0_9 = arith.constant 0 : index
    %11 = vector.load %arg4[%c1_7, %c0_8, %c0_9] : memref<9x10x512xf32, #tpu.memory_space<vmem>>, vector<1x10x512xf32>
    %12 = vector.shape_cast %11 : vector<1x10x512xf32> to vector<10x512xf32>
    %13 = arith.mulf %10, %12 : vector<10x512xf32>
    %c15_i32 = arith.constant 15 : i32
    %14 = tpu.dynamic_rotate %4 by %c15_i32 dim 1 : vector<10x512xf32>, i32 -> vector<10x512xf32>
    %c2 = arith.constant 2 : index
    %c0_10 = arith.constant 0 : index
    %c0_11 = arith.constant 0 : index
    %15 = vector.load %arg4[%c2, %c0_10, %c0_11] : memref<9x10x512xf32, #tpu.memory_space<vmem>>, vector<1x10x512xf32>
    %16 = vector.shape_cast %15 : vector<1x10x512xf32> to vector<10x512xf32>
    %17 = arith.mulf %14, %16 : vector<10x512xf32>
    %c1_i32 = arith.constant 1 : i32
    %18 = tpu.dynamic_rotate %4 by %c1_i32 dim 1 : vector<10x512xf32>, i32 -> vector<10x512xf32>
    %c3 = arith.constant 3 : index
    %c0_12 = arith.constant 0 : index
    %c0_13 = arith.constant 0 : index
    %19 = vector.load %arg4[%c3, %c0_12, %c0_13] : memref<9x10x512xf32, #tpu.memory_space<vmem>>, vector<1x10x512xf32>
    %20 = vector.shape_cast %19 : vector<1x10x512xf32> to vector<10x512xf32>
    %21 = arith.mulf %18, %20 : vector<10x512xf32>
    %c511_i32 = arith.constant 511 : i32
    %22 = tpu.dynamic_rotate %4 by %c511_i32 dim 1 : vector<10x512xf32>, i32 -> vector<10x512xf32>
    %c5 = arith.constant 5 : index
    %c0_14 = arith.constant 0 : index
    %c0_15 = arith.constant 0 : index
    %23 = vector.load %arg4[%c5, %c0_14, %c0_15] : memref<9x10x512xf32, #tpu.memory_space<vmem>>, vector<1x10x512xf32>
    %24 = vector.shape_cast %23 : vector<1x10x512xf32> to vector<10x512xf32>
    %25 = arith.mulf %22, %24 : vector<10x512xf32>
    %c497_i32 = arith.constant 497 : i32
    %26 = tpu.dynamic_rotate %4 by %c497_i32 dim 1 : vector<10x512xf32>, i32 -> vector<10x512xf32>
    %c6 = arith.constant 6 : index
    %c0_16 = arith.constant 0 : index
    %c0_17 = arith.constant 0 : index
    %27 = vector.load %arg4[%c6, %c0_16, %c0_17] : memref<9x10x512xf32, #tpu.memory_space<vmem>>, vector<1x10x512xf32>
    %28 = vector.shape_cast %27 : vector<1x10x512xf32> to vector<10x512xf32>
    %29 = arith.mulf %26, %28 : vector<10x512xf32>
    %c496_i32 = arith.constant 496 : i32
    %30 = tpu.dynamic_rotate %4 by %c496_i32 dim 1 : vector<10x512xf32>, i32 -> vector<10x512xf32>
    %c7 = arith.constant 7 : index
    %c0_18 = arith.constant 0 : index
    %c0_19 = arith.constant 0 : index
    %31 = vector.load %arg4[%c7, %c0_18, %c0_19] : memref<9x10x512xf32, #tpu.memory_space<vmem>>, vector<1x10x512xf32>
    %32 = vector.shape_cast %31 : vector<1x10x512xf32> to vector<10x512xf32>
    %33 = arith.mulf %30, %32 : vector<10x512xf32>
    %c495_i32 = arith.constant 495 : i32
    %34 = tpu.dynamic_rotate %4 by %c495_i32 dim 1 : vector<10x512xf32>, i32 -> vector<10x512xf32>
    %c8 = arith.constant 8 : index
    %c0_20 = arith.constant 0 : index
    %c0_21 = arith.constant 0 : index
    %35 = vector.load %arg4[%c8, %c0_20, %c0_21] : memref<9x10x512xf32, #tpu.memory_space<vmem>>, vector<1x10x512xf32>
    %36 = vector.shape_cast %35 : vector<1x10x512xf32> to vector<10x512xf32>
    %37 = arith.mulf %34, %36 : vector<10x512xf32>
    %38 = tpu.concatenate %9, %13, %17, %21, %4, %25, %29, %33, %37, %5 in 0 : vector<10x512xf32>, vector<10x512xf32>, vector<10x512xf32>, vector<10x512xf32>, vector<10x512xf32>, vector<10x512xf32>, vector<10x512xf32>, vector<10x512xf32>, vector<10x512xf32>, vector<1x512xf32> -> vector<91x512xf32>
    %c0_22 = arith.constant 0 : index
    %c0_23 = arith.constant 0 : index
    %39 = vector.load %arg2[%c0_22, %c0_23] : memref<10x91xf32, #tpu.memory_space<vmem>>, vector<10x91xf32>
    %cst_24 = arith.constant dense<0.000000e+00> : vector<10x512xf32>
    %40 = tpu.matmul %39, %38, %cst_24 {dimension_numbers = #tpu.dot_dimension_numbers<[1], [0], [0], [1], [0, 0, 1, 1], [], []>} : vector<10x91xf32>, vector<91x512xf32>, vector<10x512xf32> -> vector<10x512xf32>
    %cst_25 = arith.constant 0.000000e+00 : f32
    %41 = vector.broadcast %cst_25 : f32 to vector<10x512xf32>
    %42 = arith.maximumf %40, %41 : vector<10x512xf32>
    %c17_i32_26 = arith.constant 17 : i32
    %43 = tpu.dynamic_rotate %42 by %c17_i32_26 dim 1 : vector<10x512xf32>, i32 -> vector<10x512xf32>
    %c0_27 = arith.constant 0 : index
    %c0_28 = arith.constant 0 : index
    %c0_29 = arith.constant 0 : index
    %44 = vector.load %arg4[%c0_27, %c0_28, %c0_29] : memref<9x10x512xf32, #tpu.memory_space<vmem>>, vector<1x10x512xf32>
    %45 = vector.shape_cast %44 : vector<1x10x512xf32> to vector<10x512xf32>
    %46 = arith.mulf %43, %45 : vector<10x512xf32>
    %c16_i32_30 = arith.constant 16 : i32
    %47 = tpu.dynamic_rotate %42 by %c16_i32_30 dim 1 : vector<10x512xf32>, i32 -> vector<10x512xf32>
    %c1_31 = arith.constant 1 : index
    %c0_32 = arith.constant 0 : index
    %c0_33 = arith.constant 0 : index
    %48 = vector.load %arg4[%c1_31, %c0_32, %c0_33] : memref<9x10x512xf32, #tpu.memory_space<vmem>>, vector<1x10x512xf32>
    %49 = vector.shape_cast %48 : vector<1x10x512xf32> to vector<10x512xf32>
    %50 = arith.mulf %47, %49 : vector<10x512xf32>
    %c15_i32_34 = arith.constant 15 : i32
    %51 = tpu.dynamic_rotate %42 by %c15_i32_34 dim 1 : vector<10x512xf32>, i32 -> vector<10x512xf32>
    %c2_35 = arith.constant 2 : index
    %c0_36 = arith.constant 0 : index
    %c0_37 = arith.constant 0 : index
    %52 = vector.load %arg4[%c2_35, %c0_36, %c0_37] : memref<9x10x512xf32, #tpu.memory_space<vmem>>, vector<1x10x512xf32>
    %53 = vector.shape_cast %52 : vector<1x10x512xf32> to vector<10x512xf32>
    %54 = arith.mulf %51, %53 : vector<10x512xf32>
    %c1_i32_38 = arith.constant 1 : i32
    %55 = tpu.dynamic_rotate %42 by %c1_i32_38 dim 1 : vector<10x512xf32>, i32 -> vector<10x512xf32>
    %c3_39 = arith.constant 3 : index
    %c0_40 = arith.constant 0 : index
    %c0_41 = arith.constant 0 : index
    %56 = vector.load %arg4[%c3_39, %c0_40, %c0_41] : memref<9x10x512xf32, #tpu.memory_space<vmem>>, vector<1x10x512xf32>
    %57 = vector.shape_cast %56 : vector<1x10x512xf32> to vector<10x512xf32>
    %58 = arith.mulf %55, %57 : vector<10x512xf32>
    %c511_i32_42 = arith.constant 511 : i32
    %59 = tpu.dynamic_rotate %42 by %c511_i32_42 dim 1 : vector<10x512xf32>, i32 -> vector<10x512xf32>
    %c5_43 = arith.constant 5 : index
    %c0_44 = arith.constant 0 : index
    %c0_45 = arith.constant 0 : index
    %60 = vector.load %arg4[%c5_43, %c0_44, %c0_45] : memref<9x10x512xf32, #tpu.memory_space<vmem>>, vector<1x10x512xf32>
    %61 = vector.shape_cast %60 : vector<1x10x512xf32> to vector<10x512xf32>
    %62 = arith.mulf %59, %61 : vector<10x512xf32>
    %c497_i32_46 = arith.constant 497 : i32
    %63 = tpu.dynamic_rotate %42 by %c497_i32_46 dim 1 : vector<10x512xf32>, i32 -> vector<10x512xf32>
    %c6_47 = arith.constant 6 : index
    %c0_48 = arith.constant 0 : index
    %c0_49 = arith.constant 0 : index
    %64 = vector.load %arg4[%c6_47, %c0_48, %c0_49] : memref<9x10x512xf32, #tpu.memory_space<vmem>>, vector<1x10x512xf32>
    %65 = vector.shape_cast %64 : vector<1x10x512xf32> to vector<10x512xf32>
    %66 = arith.mulf %63, %65 : vector<10x512xf32>
    %c496_i32_50 = arith.constant 496 : i32
    %67 = tpu.dynamic_rotate %42 by %c496_i32_50 dim 1 : vector<10x512xf32>, i32 -> vector<10x512xf32>
    %c7_51 = arith.constant 7 : index
    %c0_52 = arith.constant 0 : index
    %c0_53 = arith.constant 0 : index
    %68 = vector.load %arg4[%c7_51, %c0_52, %c0_53] : memref<9x10x512xf32, #tpu.memory_space<vmem>>, vector<1x10x512xf32>
    %69 = vector.shape_cast %68 : vector<1x10x512xf32> to vector<10x512xf32>
    %70 = arith.mulf %67, %69 : vector<10x512xf32>
    %c495_i32_54 = arith.constant 495 : i32
    %71 = tpu.dynamic_rotate %42 by %c495_i32_54 dim 1 : vector<10x512xf32>, i32 -> vector<10x512xf32>
    %c8_55 = arith.constant 8 : index
    %c0_56 = arith.constant 0 : index
    %c0_57 = arith.constant 0 : index
    %72 = vector.load %arg4[%c8_55, %c0_56, %c0_57] : memref<9x10x512xf32, #tpu.memory_space<vmem>>, vector<1x10x512xf32>
    %73 = vector.shape_cast %72 : vector<1x10x512xf32> to vector<10x512xf32>
    %74 = arith.mulf %71, %73 : vector<10x512xf32>
    %75 = tpu.concatenate %46, %50, %54, %58, %42, %62, %66, %70, %74, %5 in 0 : vector<10x512xf32>, vector<10x512xf32>, vector<10x512xf32>, vector<10x512xf32>, vector<10x512xf32>, vector<10x512xf32>, vector<10x512xf32>, vector<10x512xf32>, vector<10x512xf32>, vector<1x512xf32> -> vector<91x512xf32>
    %c0_58 = arith.constant 0 : index
    %c0_59 = arith.constant 0 : index
    %76 = vector.load %arg3[%c0_58, %c0_59] : memref<10x91xf32, #tpu.memory_space<vmem>>, vector<10x91xf32>
    %cst_60 = arith.constant dense<0.000000e+00> : vector<10x512xf32>
    %77 = tpu.matmul %76, %75, %cst_60 {dimension_numbers = #tpu.dot_dimension_numbers<[1], [0], [0], [1], [0, 0, 1, 1], [], []>} : vector<10x91xf32>, vector<91x512xf32>, vector<10x512xf32> -> vector<10x512xf32>
    %cst_61 = arith.constant 0.000000e+00 : f32
    %78 = vector.broadcast %cst_61 : f32 to vector<10x512xf32>
    %79 = arith.maximumf %77, %78 : vector<10x512xf32>
    %80 = vector.extract_strided_slice %79 {offsets = [0, 0], sizes = [10, 256], strides = [1, 1]} : vector<10x512xf32> to vector<10x256xf32>
    %c0_62 = arith.constant 0 : index
    %c0_63 = arith.constant 0 : index
    %c0_64 = arith.constant 0 : index
    %81 = vector.load %arg5[%c0_62, %c0_63, %c0_64] : memref<2x10x256xf32, #tpu.memory_space<vmem>>, vector<1x10x256xf32>
    %82 = vector.shape_cast %81 : vector<1x10x256xf32> to vector<10x256xf32>
    %83 = vector.shape_cast %80 : vector<10x256xf32> to vector<1x10x256xf32>
    tpu.vector_store %arg5[%c0_62, %c0_63, %c0_64], %83 {strides = array<i32>} : memref<2x10x256xf32, #tpu.memory_space<vmem>>, vector<1x10x256xf32>,
    %84 = vector.extract_strided_slice %79 {offsets = [0, 256], sizes = [10, 256], strides = [1, 1]} : vector<10x512xf32> to vector<10x256xf32>
    %c1_65 = arith.constant 1 : index
    %c0_66 = arith.constant 0 : index
    %c0_67 = arith.constant 0 : index
    %85 = vector.load %arg5[%c1_65, %c0_66, %c0_67] : memref<2x10x256xf32, #tpu.memory_space<vmem>>, vector<1x10x256xf32>
    %86 = vector.shape_cast %85 : vector<1x10x256xf32> to vector<10x256xf32>
    %87 = vector.shape_cast %84 : vector<10x256xf32> to vector<1x10x256xf32>
    tpu.vector_store %arg5[%c1_65, %c0_66, %c0_67], %87 {strides = array<i32>} : memref<2x10x256xf32, #tpu.memory_space<vmem>>, vector<1x10x256xf32>,
    return
  }
  func.func @transform_0(%arg0: i32) -> (i32, i32, i32) {
    %c0_i32 = arith.constant 0 : i32
    %c0_i32_0 = arith.constant 0 : i32
    %c0_i32_1 = arith.constant 0 : i32
    return %arg0, %c0_i32, %c0_i32_0 : i32, i32, i32
  }
  func.func @transform_1(%arg0: i32) -> (i32, i32) {
    %c0_i32 = arith.constant 0 : i32
    %c0_i32_0 = arith.constant 0 : i32
    %c0_i32_1 = arith.constant 0 : i32
    return %c0_i32, %c0_i32_0 : i32, i32
  }
  func.func @transform_2(%arg0: i32) -> (i32, i32) {
    %c0_i32 = arith.constant 0 : i32
    %c0_i32_0 = arith.constant 0 : i32
    %c0_i32_1 = arith.constant 0 : i32
    return %c0_i32, %c0_i32_0 : i32, i32
  }
  func.func @transform_3(%arg0: i32) -> (i32, i32, i32) {
    %c0_i32 = arith.constant 0 : i32
    %c0_i32_0 = arith.constant 0 : i32
    %c0_i32_1 = arith.constant 0 : i32
    %c0_i32_2 = arith.constant 0 : i32
    return %c0_i32, %c0_i32_0, %c0_i32_1 : i32, i32, i32
  }
  func.func @transform_4(%arg0: i32) -> (i32, i32, i32) {
    %c0_i32 = arith.constant 0 : i32
    %c0_i32_0 = arith.constant 0 : i32
    %c0_i32_1 = arith.constant 0 : i32
    return %arg0, %c0_i32, %c0_i32_0 : i32, i32, i32
  }
}

</mosaic_0001>

<llo_original>
// kernel: model_forward.1
$region0: #{model_forward.1}
  #allocation0 [shape = 'u32[]', space=smem, size = 0x4, offset = 0x4, fixed_abs, tag = 'smem constant byte address 0x4 - core index']
  #allocation1 [shape = 'u32[72,128]{1,0:T(1,128)}', space=vmem, size = 0x9000, scoped, tag = 'internal scratch']
  %s0 = inlined_call_operand.vmem [shape: f32[2,10,256], index: 0, kind: input, shape index: {}]
  %s1 = inlined_call_operand.vmem [shape: f32[10,91], index: 1, kind: input, shape index: {}]
  %s2 = inlined_call_operand.vmem [shape: f32[10,91], index: 2, kind: input, shape index: {}]
  %s3 = inlined_call_operand.vmem [shape: f32[9,10,512], index: 3, kind: input, shape index: {}]
  %s4 = inlined_call_operand.vmem [shape: f32[2,10,256], index: 4, kind: output, shape index: {}]
  %s5 = sld [smem:[#allocation0]]
  $region26: #{model_forward.1} parent=0
    _
  %s7 = ssub.s32 1, %s5
  %s8 = scalar_select 0, %s7, %s5
  // Predicated region
  $region2: #{model_forward.1} parent=0 // pred_check
    _
  $region3: #{model_forward.1} parent=0 // pred_check_branch
    %10 = sbr.rel (0) target = $region5
  $region4: #{model_forward.1} parent=0 // pred_region
    _
  $region5: #{model_forward.1} parent=0 // pred_fallthru
    _
  // Predicated region
  $region6: #{model_forward.1} parent=0 // pred_check
    _
  $region7: #{model_forward.1} parent=0 // pred_check_branch
    %12 = sbr.rel (0) target = $region9
  $region8: #{model_forward.1} parent=0 // pred_region
    _
  $region9: #{model_forward.1} parent=0 // pred_fallthru
    _
  // Predicated region
  $region10: #{model_forward.1} parent=0 // pred_check
    _
  $region11: #{model_forward.1} parent=0 // pred_check_branch
    %14 = sbr.rel (0) target = $region13
  $region12: #{model_forward.1} parent=0 // pred_region
    _
  $region13: #{model_forward.1} parent=0 // pred_fallthru
    _
  // Predicated region
  $region14: #{model_forward.1} parent=0 // pred_check
    _
  $region15: #{model_forward.1} parent=0 // pred_check_branch
    %16 = sbr.rel (0) target = $region17
  $region16: #{model_forward.1} parent=0 // pred_region
    _
  $region17: #{model_forward.1} parent=0 // pred_fallthru
    _
  %v17 = vld [vmem:[%s0] sm:$0xff]
  %v18 = vld [vmem:[%s0 + $0x8] sm:$0xff]
  %v19 = vld [vmem:[%s0 + $0x10] sm:$0x3]
  %v20 = vld [vmem:[%s0 + $0x18] sm:$0x3]
  %s21 = scalar_lea.vmem %s0, 32
  %v22 = vld [vmem:[%s21] sm:$0xff]
  %v23 = vld [vmem:[%s21 + $0x8] sm:$0xff]
  %v24 = vld [vmem:[%s21 + $0x10] sm:$0x3]
  %v25 = vld [vmem:[%s21 + $0x18] sm:$0x3]
  %26 = vrot.lane.b32.xlu0 %v17, 17
  %v27 = vpop.permute.xlu0 %26
  %28 = vrot.lane.b32.xlu0 %v19, 17
  %v29 = vpop.permute.xlu0 %28
  %30 = vrot.lane.b32.xlu0 %v18, 17
  %v31 = vpop.permute.xlu0 %30
  %32 = vrot.lane.b32.xlu0 %v20, 17
  %v33 = vpop.permute.xlu0 %32
  %34 = vrot.lane.b32.xlu0 %v22, 17
  %v35 = vpop.permute.xlu0 %34
  %36 = vrot.lane.b32.xlu0 %v24, 17
  %v37 = vpop.permute.xlu0 %36
  %38 = vrot.lane.b32.xlu0 %v23, 17
  %v39 = vpop.permute.xlu0 %38
  %40 = vrot.lane.b32.xlu0 %v25, 17
  %v41 = vpop.permute.xlu0 %40
  %v42 = vlaneseq
  %v43 = vand.u32 %v42, 127
  %vm44 = vcmp.lt.s32.totalorder %v43, 17
  %v45 = vsel %vm44, %v35, %v39
  %v46 = vsel %vm44, %v37, %v41
  %v47 = vsel %vm44, %v31, %v35
  %v48 = vsel %vm44, %v33, %v37
  %v49 = vsel %vm44, %v27, %v31
  %v50 = vsel %vm44, %v29, %v33
  %v51 = vsel %vm44, %v39, %v27
  %v52 = vsel %vm44, %v41, %v29
  %v53 = vld [vmem:[%s3] sm:$0xff]
  %v54 = vld [vmem:[%s3 + $0x8] sm:$0xff]
  %v55 = vld [vmem:[%s3 + $0x10] sm:$0xff]
  %v56 = vld [vmem:[%s3 + $0x18] sm:$0xff]
  %v57 = vld [vmem:[%s3 + $0x20] sm:$0x3]
  %v58 = vld [vmem:[%s3 + $0x28] sm:$0x3]
  %v59 = vld [vmem:[%s3 + $0x30] sm:$0x3]
  %v60 = vld [vmem:[%s3 + $0x38] sm:$0x3]
  %v61 = vmul.f32 %v51, %v53
  %v62 = vmul.f32 %v49, %v54
  %v63 = vmul.f32 %v47, %v55
  %v64 = vmul.f32 %v45, %v56
  %v65 = vmul.f32 %v52, %v57
  %v66 = vmul.f32 %v50, %v58
  %v67 = vmul.f32 %v48, %v59
  %v68 = vmul.f32 %v46, %v60
  %69 = vrot.lane.b32.xlu0 %v17, 16
  %v70 = vpop.permute.xlu0 %69
  %71 = vrot.lane.b32.xlu0 %v19, 16
  %v72 = vpop.permute.xlu0 %71
  %73 = vrot.lane.b32.xlu0 %v18, 16
  %v74 = vpop.permute.xlu0 %73
  %75 = vrot.lane.b32.xlu0 %v20, 16
  %v76 = vpop.permute.xlu0 %75
  %77 = vrot.lane.b32.xlu0 %v22, 16
  %v78 = vpop.permute.xlu0 %77
  %79 = vrot.lane.b32.xlu0 %v24, 16
  %v80 = vpop.permute.xlu0 %79
  %81 = vrot.lane.b32.xlu0 %v23, 16
  %v82 = vpop.permute.xlu0 %81
  %83 = vrot.lane.b32.xlu0 %v25, 16
  %v84 = vpop.permute.xlu0 %83
  %vm85 = vcmp.lt.s32.totalorder %v43, 16
  %v86 = vsel %vm85, %v78, %v82
  %v87 = vsel %vm85, %v80, %v84
  %v88 = vsel %vm85, %v74, %v78
  %v89 = vsel %vm85, %v76, %v80
  %v90 = vsel %vm85, %v70, %v74
  %v91 = vsel %vm85, %v72, %v76
  %v92 = vsel %vm85, %v82, %v70
  %v93 = vsel %vm85, %v84, %v72
  %s94 = scalar_lea.vmem %s3, 64
  %v95 = vld [vmem:[%s94] sm:$0xff]
  %v96 = vld [vmem:[%s94 + $0x8] sm:$0xff]
  %v97 = vld [vmem:[%s94 + $0x10] sm:$0xff]
  %v98 = vld [vmem:[%s94 + $0x18] sm:$0xff]
  %v99 = vld [vmem:[%s94 + $0x20] sm:$0x3]
  %v100 = vld [vmem:[%s94 + $0x28] sm:$0x3]
  %v101 = vld [vmem:[%s94 + $0x30] sm:$0x3]
  %v102 = vld [vmem:[%s94 + $0x38] sm:$0x3]
  %v103 = vmul.f32 %v92, %v95
  %v104 = vmul.f32 %v90, %v96
  %v105 = vmul.f32 %v88, %v97
  %v106 = vmul.f32 %v86, %v98
  %v107 = vmul.f32 %v93, %v99
  %v108 = vmul.f32 %v91, %v100
  %v109 = vmul.f32 %v89, %v101
  %v110 = vmul.f32 %v87, %v102
  %111 = vrot.lane.b32.xlu0 %v17, 15
  %v112 = vpop.permute.xlu0 %111
  %113 = vrot.lane.b32.xlu0 %v19, 15
  %v114 = vpop.permute.xlu0 %113
  %115 = vrot.lane.b32.xlu0 %v18, 15
  %v116 = vpop.permute.xlu0 %115
  %117 = vrot.lane.b32.xlu0 %v20, 15
  %v118 = vpop.permute.xlu0 %117
  %119 = vrot.lane.b32.xlu0 %v22, 15
  %v120 = vpop.permute.xlu0 %119
  %121 = vrot.lane.b32.xlu0 %v24, 15
  %v122 = vpop.permute.xlu0 %121
  %123 = vrot.lane.b32.xlu0 %v23, 15
  %v124 = vpop.permute.xlu0 %123
  %125 = vrot.lane.b32.xlu0 %v25, 15
  %v126 = vpop.permute.xlu0 %125
  %vm127 = vcmp.lt.s32.totalorder %v43, 15
  %v128 = vsel %vm127, %v120, %v124
  %v129 = vsel %vm127, %v122, %v126
  %v130 = vsel %vm127, %v116, %v120
  %v131 = vsel %vm127, %v118, %v122
  %v132 = vsel %vm127, %v112, %v116
  %v133 = vsel %vm127, %v114, %v118
  %v134 = vsel %vm127, %v124, %v112
  %v135 = vsel %vm127, %v126, %v114
  %s136 = scalar_lea.vmem %s3, 128
  %v137 = vld [vmem:[%s136] sm:$0xff]
  %v138 = vld [vmem:[%s136 + $0x8] sm:$0xff]
  %v139 = vld [vmem:[%s136 + $0x10] sm:$0xff]
  %v140 = vld [vmem:[%s136 + $0x18] sm:$0xff]
  %v141 = vld [vmem:[%s136 + $0x20] sm:$0x3]
  %v142 = vld [vmem:[%s136 + $0x28] sm:$0x3]
  %v143 = vld [vmem:[%s136 + $0x30] sm:$0x3]
  %v144 = vld [vmem:[%s136 + $0x38] sm:$0x3]
  %v145 = vmul.f32 %v134, %v137
  %v146 = vmul.f32 %v132, %v138
  %v147 = vmul.f32 %v130, %v139
  %v148 = vmul.f32 %v128, %v140
  %v149 = vmul.f32 %v135, %v141
  %v150 = vmul.f32 %v133, %v142
  %v151 = vmul.f32 %v131, %v143
  %v152 = vmul.f32 %v129, %v144
  %153 = vrot.lane.b32.xlu0 %v17, 1
  %v154 = vpop.permute.xlu0 %153
  %155 = vrot.lane.b32.xlu0 %v19, 1
  %v156 = vpop.permute.xlu0 %155
  %157 = vrot.lane.b32.xlu0 %v18, 1
  %v158 = vpop.permute.xlu0 %157
  %159 = vrot.lane.b32.xlu0 %v20, 1
  %v160 = vpop.permute.xlu0 %159
  %161 = vrot.lane.b32.xlu0 %v22, 1
  %v162 = vpop.permute.xlu0 %161
  %163 = vrot.lane.b32.xlu0 %v24, 1
  %v164 = vpop.permute.xlu0 %163
  %165 = vrot.lane.b32.xlu0 %v23, 1
  %v166 = vpop.permute.xlu0 %165
  %167 = vrot.lane.b32.xlu0 %v25, 1
  %v168 = vpop.permute.xlu0 %167
  %vm169 = vcmp.lt.s32.totalorder %v43, 1
  %v170 = vsel %vm169, %v162, %v166
  %v171 = vsel %vm169, %v164, %v168
  %v172 = vsel %vm169, %v158, %v162
  %v173 = vsel %vm169, %v160, %v164
  %v174 = vsel %vm169, %v154, %v158
  %v175 = vsel %vm169, %v156, %v160
  %v176 = vsel %vm169, %v166, %v154
  %v177 = vsel %vm169, %v168, %v156
  %s178 = scalar_lea.vmem %s3, 192
  %v179 = vld [vmem:[%s178] sm:$0xff]
  %v180 = vld [vmem:[%s178 + $0x8] sm:$0xff]
  %v181 = vld [vmem:[%s178 + $0x10] sm:$0xff]
  %v182 = vld [vmem:[%s178 + $0x18] sm:$0xff]
  %v183 = vld [vmem:[%s178 + $0x20] sm:$0x3]
  %v184 = vld [vmem:[%s178 + $0x28] sm:$0x3]
  %v185 = vld [vmem:[%s178 + $0x30] sm:$0x3]
  %v186 = vld [vmem:[%s178 + $0x38] sm:$0x3]
  %v187 = vmul.f32 %v176, %v179
  %v188 = vmul.f32 %v174, %v180
  %v189 = vmul.f32 %v172, %v181
  %v190 = vmul.f32 %v170, %v182
  %v191 = vmul.f32 %v177, %v183
  %v192 = vmul.f32 %v175, %v184
  %v193 = vmul.f32 %v173, %v185
  %v194 = vmul.f32 %v171, %v186
  %195 = vrot.lane.b32.xlu0 %v17, 127
  %v196 = vpop.permute.xlu0 %195
  %197 = vrot.lane.b32.xlu0 %v19, 127
  %v198 = vpop.permute.xlu0 %197
  %199 = vrot.lane.b32.xlu0 %v18, 127
  %v200 = vpop.permute.xlu0 %199
  %201 = vrot.lane.b32.xlu0 %v20, 127
  %v202 = vpop.permute.xlu0 %201
  %203 = vrot.lane.b32.xlu0 %v22, 127
  %v204 = vpop.permute.xlu0 %203
  %205 = vrot.lane.b32.xlu0 %v24, 127
  %v206 = vpop.permute.xlu0 %205
  %207 = vrot.lane.b32.xlu0 %v23, 127
  %v208 = vpop.permute.xlu0 %207
  %209 = vrot.lane.b32.xlu0 %v25, 127
  %v210 = vpop.permute.xlu0 %209
  %vm211 = vcmp.lt.s32.totalorder %v43, 127
  %v212 = vsel %vm211, %v204, %v208
  %v213 = vsel %vm211, %v206, %v210
  %v214 = vsel %vm211, %v200, %v204
  %v215 = vsel %vm211, %v202, %v206
  %v216 = vsel %vm211, %v196, %v200
  %v217 = vsel %vm211, %v198, %v202
  %v218 = vsel %vm211, %v208, %v196
  %v219 = vsel %vm211, %v210, %v198
  %s220 = scalar_lea.vmem %s3, 320
  %v221 = vld [vmem:[%s220] sm:$0xff]
  %v222 = vld [vmem:[%s220 + $0x8] sm:$0xff]
  %v223 = vld [vmem:[%s220 + $0x10] sm:$0xff]
  %v224 = vld [vmem:[%s220 + $0x18] sm:$0xff]
  %v225 = vld [vmem:[%s220 + $0x20] sm:$0x3]
  %v226 = vld [vmem:[%s220 + $0x28] sm:$0x3]
  %v227 = vld [vmem:[%s220 + $0x30] sm:$0x3]
  %v228 = vld [vmem:[%s220 + $0x38] sm:$0x3]
  %v229 = vmul.f32 %v216, %v221
  %v230 = vmul.f32 %v214, %v222
  %v231 = vmul.f32 %v212, %v223
  %v232 = vmul.f32 %v218, %v224
  %v233 = vmul.f32 %v217, %v225
  %v234 = vmul.f32 %v215, %v226
  %v235 = vmul.f32 %v213, %v227
  %v236 = vmul.f32 %v219, %v228
  %237 = vrot.lane.b32.xlu0 %v17, 113
  %v238 = vpop.permute.xlu0 %237
  %239 = vrot.lane.b32.xlu0 %v19, 113
  %v240 = vpop.permute.xlu0 %239
  %241 = vrot.lane.b32.xlu0 %v18, 113
  %v242 = vpop.permute.xlu0 %241
  %243 = vrot.lane.b32.xlu0 %v20, 113
  %v244 = vpop.permute.xlu0 %243
  %245 = vrot.lane.b32.xlu0 %v22, 113
  %v246 = vpop.permute.xlu0 %245
  %247 = vrot.lane.b32.xlu0 %v24, 113
  %v248 = vpop.permute.xlu0 %247
  %249 = vrot.lane.b32.xlu0 %v23, 113
  %v250 = vpop.permute.xlu0 %249
  %251 = vrot.lane.b32.xlu0 %v25, 113
  %v252 = vpop.permute.xlu0 %251
  %vm253 = vcmp.lt.s32.totalorder %v43, 113
  %v254 = vsel %vm253, %v246, %v250
  %v255 = vsel %vm253, %v248, %v252
  %v256 = vsel %vm253, %v242, %v246
  %v257 = vsel %vm253, %v244, %v248
  %v258 = vsel %vm253, %v238, %v242
  %v259 = vsel %vm253, %v240, %v244
  %v260 = vsel %vm253, %v250, %v238
  %v261 = vsel %vm253, %v252, %v240
  %s262 = scalar_lea.vmem %s3, 384
  %v263 = vld [vmem:[%s262] sm:$0xff]
  %v264 = vld [vmem:[%s262 + $0x8] sm:$0xff]
  %v265 = vld [vmem:[%s262 + $0x10] sm:$0xff]
  %v266 = vld [vmem:[%s262 + $0x18] sm:$0xff]
  %v267 = vld [vmem:[%s262 + $0x20] sm:$0x3]
  %v268 = vld [vmem:[%s262 + $0x28] sm:$0x3]
  %v269 = vld [vmem:[%s262 + $0x30] sm:$0x3]
  %v270 = vld [vmem:[%s262 + $0x38] sm:$0x3]
  %v271 = vmul.f32 %v258, %v263
  %v272 = vmul.f32 %v256, %v264
  %v273 = vmul.f32 %v254, %v265
  %v274 = vmul.f32 %v260, %v266
  %v275 = vmul.f32 %v259, %v267
  %v276 = vmul.f32 %v257, %v268
  %v277 = vmul.f32 %v255, %v269
  %v278 = vmul.f32 %v261, %v270
  %279 = vrot.lane.b32.xlu0 %v17, 112
  %v280 = vpop.permute.xlu0 %279
  %281 = vrot.lane.b32.xlu0 %v19, 112
  %v282 = vpop.permute.xlu0 %281
  %283 = vrot.lane.b32.xlu0 %v18, 112
  %v284 = vpop.permute.xlu0 %283
  %285 = vrot.lane.b32.xlu0 %v20, 112
  %v286 = vpop.permute.xlu0 %285
  %287 = vrot.lane.b32.xlu0 %v22, 112
  %v288 = vpop.permute.xlu0 %287
  %289 = vrot.lane.b32.xlu0 %v24, 112
  %v290 = vpop.permute.xlu0 %289
  %291 = vrot.lane.b32.xlu0 %v23, 112
  %v292 = vpop.permute.xlu0 %291
  %293 = vrot.lane.b32.xlu0 %v25, 112
  %v294 = vpop.permute.xlu0 %293
  %vm295 = vcmp.lt.s32.totalorder %v43, 112
  %v296 = vsel %vm295, %v288, %v292
  %v297 = vsel %vm295, %v290, %v294
  %v298 = vsel %vm295, %v284, %v288
  %v299 = vsel %vm295, %v286, %v290
  %v300 = vsel %vm295, %v280, %v284
  %v301 = vsel %vm295, %v282, %v286
  %v302 = vsel %vm295, %v292, %v280
  %v303 = vsel %vm295, %v294, %v282
  %s304 = scalar_lea.vmem %s3, 448
  %v305 = vld [vmem:[%s304] sm:$0xff]
  %v306 = vld [vmem:[%s304 + $0x8] sm:$0xff]
  %v307 = vld [vmem:[%s304 + $0x10] sm:$0xff]
  %v308 = vld [vmem:[%s304 + $0x18] sm:$0xff]
  %v309 = vld [vmem:[%s304 + $0x20] sm:$0x3]
  %v310 = vld [vmem:[%s304 + $0x28] sm:$0x3]
  %v311 = vld [vmem:[%s304 + $0x30] sm:$0x3]
  %v312 = vld [vmem:[%s304 + $0x38] sm:$0x3]
  %v313 = vmul.f32 %v300, %v305
  %v314 = vmul.f32 %v298, %v306
  %v315 = vmul.f32 %v296, %v307
  %v316 = vmul.f32 %v302, %v308
  %v317 = vmul.f32 %v301, %v309
  %v318 = vmul.f32 %v299, %v310
  %v319 = vmul.f32 %v297, %v311
  %v320 = vmul.f32 %v303, %v312
  %321 = vrot.lane.b32.xlu0 %v17, 111
  %v322 = vpop.permute.xlu0 %321
  %323 = vrot.lane.b32.xlu0 %v19, 111
  %v324 = vpop.permute.xlu0 %323
  %325 = vrot.lane.b32.xlu0 %v18, 111
  %v326 = vpop.permute.xlu0 %325
  %327 = vrot.lane.b32.xlu0 %v20, 111
  %v328 = vpop.permute.xlu0 %327
  %329 = vrot.lane.b32.xlu0 %v22, 111
  %v330 = vpop.permute.xlu0 %329
  %331 = vrot.lane.b32.xlu0 %v24, 111
  %v332 = vpop.permute.xlu0 %331
  %333 = vrot.lane.b32.xlu0 %v23, 111
  %v334 = vpop.permute.xlu0 %333
  %335 = vrot.lane.b32.xlu0 %v25, 111
  %v336 = vpop.permute.xlu0 %335
  %vm337 = vcmp.lt.s32.totalorder %v43, 111
  %v338 = vsel %vm337, %v330, %v334
  %v339 = vsel %vm337, %v332, %v336
  %v340 = vsel %vm337, %v326, %v330
  %v341 = vsel %vm337, %v328, %v332
  %v342 = vsel %vm337, %v322, %v326
  %v343 = vsel %vm337, %v324, %v328
  %v344 = vsel %vm337, %v334, %v322
  %v345 = vsel %vm337, %v336, %v324
  %s346 = scalar_lea.vmem %s3, 512
  %v347 = vld [vmem:[%s346] sm:$0xff]
  %v348 = vld [vmem:[%s346 + $0x8] sm:$0xff]
  %v349 = vld [vmem:[%s346 + $0x10] sm:$0xff]
  %v350 = vld [vmem:[%s346 + $0x18] sm:$0xff]
  %v351 = vld [vmem:[%s346 + $0x20] sm:$0x3]
  %v352 = vld [vmem:[%s346 + $0x28] sm:$0x3]
  %v353 = vld [vmem:[%s346 + $0x30] sm:$0x3]
  %v354 = vld [vmem:[%s346 + $0x38] sm:$0x3]
  %v355 = vmul.f32 %v342, %v347
  %v356 = vmul.f32 %v340, %v348
  %v357 = vmul.f32 %v338, %v349
  %v358 = vmul.f32 %v344, %v350
  %v359 = vmul.f32 %v343, %v351
  %v360 = vmul.f32 %v341, %v352
  %v361 = vmul.f32 %v339, %v353
  %v362 = vmul.f32 %v345, %v354
  %vm371 = vcmask 1041408
  %v372 = vrot.slane %v103, 6
  %v373 = vrot.slane %v104, 6
  %v374 = vrot.slane %v105, 6
  %v375 = vrot.slane %v106, 6
  %v376 = vrot.slane %v107, 6
  %v377 = vsel %vm371, %v372, %v376
  %v378 = vrot.slane %v108, 6
  %v379 = vsel %vm371, %v373, %v378
  %v380 = vrot.slane %v109, 6
  %v381 = vsel %vm371, %v374, %v380
  %v382 = vrot.slane %v110, 6
  %v383 = vsel %vm371, %v375, %v382
  %vm400 = vcmask 1043456
  %v401 = vrot.slane %v145, 4
  %v402 = vrot.slane %v146, 4
  %v403 = vrot.slane %v147, 4
  %v404 = vrot.slane %v148, 4
  %v405 = vrot.slane %v149, 4
  %v406 = vsel %vm400, %v401, %v405
  %v407 = vrot.slane %v150, 4
  %v408 = vsel %vm400, %v402, %v407
  %v409 = vrot.slane %v151, 4
  %v410 = vsel %vm400, %v403, %v409
  %v411 = vrot.slane %v152, 4
  %v412 = vsel %vm400, %v404, %v411
  %vm429 = vcmask 1045504
  %v430 = vrot.slane %v187, 2
  %v431 = vrot.slane %v188, 2
  %v432 = vrot.slane %v189, 2
  %v433 = vrot.slane %v190, 2
  %v434 = vrot.slane %v191, 2
  %v435 = vsel %vm429, %v430, %v434
  %v436 = vrot.slane %v192, 2
  %v437 = vsel %vm429, %v431, %v436
  %v438 = vrot.slane %v193, 2
  %v439 = vsel %vm429, %v432, %v438
  %v440 = vrot.slane %v194, 2
  %v441 = vsel %vm429, %v433, %v440
  %v458 = vrot.slane %v229, 6
  %v459 = vrot.slane %v230, 6
  %v460 = vrot.slane %v231, 6
  %v461 = vrot.slane %v232, 6
  %v462 = vrot.slane %v233, 6
  %v463 = vsel %vm371, %v458, %v462
  %v464 = vrot.slane %v234, 6
  %v465 = vsel %vm371, %v459, %v464
  %v466 = vrot.slane %v235, 6
  %v467 = vsel %vm371, %v460, %v466
  %v468 = vrot.slane %v236, 6
  %v469 = vsel %vm371, %v461, %v468
  %v486 = vrot.slane %v271, 4
  %v487 = vrot.slane %v272, 4
  %v488 = vrot.slane %v273, 4
  %v489 = vrot.slane %v274, 4
  %v490 = vrot.slane %v275, 4
  %v491 = vsel %vm400, %v486, %v490
  %v492 = vrot.slane %v276, 4
  %v493 = vsel %vm400, %v487, %v492
  %v494 = vrot.slane %v277, 4
  %v495 = vsel %vm400, %v488, %v494
  %v496 = vrot.slane %v278, 4
  %v497 = vsel %vm400, %v489, %v496
  %v514 = vrot.slane %v313, 2
  %v515 = vrot.slane %v314, 2
  %v516 = vrot.slane %v315, 2
  %v517 = vrot.slane %v316, 2
  %v518 = vrot.slane %v317, 2
  %v519 = vsel %vm429, %v514, %v518
  %v520 = vrot.slane %v318, 2
  %v521 = vsel %vm429, %v515, %v520
  %v522 = vrot.slane %v319, 2
  %v523 = vsel %vm429, %v516, %v522
  %v524 = vrot.slane %v320, 2
  %v525 = vsel %vm429, %v517, %v524
  %v534 = vsel %vm371, %v65, %v372
  %v535 = vsel %vm371, %v66, %v373
  %v536 = vsel %vm371, %v67, %v374
  %v537 = vsel %vm371, %v68, %v375
  %v538 = vsel %vm400, %v377, %v401
  %v539 = vsel %vm400, %v379, %v402
  %v540 = vsel %vm400, %v381, %v403
  %v541 = vsel %vm400, %v383, %v404
  %v542 = vsel %vm429, %v406, %v430
  %v543 = vsel %vm429, %v408, %v431
  %v544 = vsel %vm429, %v410, %v432
  %v545 = vsel %vm429, %v412, %v433
  %v546 = vsel %vm371, %v19, %v458
  %v547 = vsel %vm371, %v20, %v459
  %v548 = vsel %vm371, %v24, %v460
  %v549 = vsel %vm371, %v25, %v461
  %v550 = vsel %vm400, %v463, %v486
  %v551 = vsel %vm400, %v465, %v487
  %v552 = vsel %vm400, %v467, %v488
  %v553 = vsel %vm400, %v469, %v489
  %v554 = vsel %vm429, %v491, %v514
  %v555 = vsel %vm429, %v493, %v515
  %v556 = vsel %vm429, %v495, %v516
  %v557 = vsel %vm429, %v497, %v517
  %v558 = vsel %vm371, %v359, 1.0
  %v559 = vsel %vm371, %v360, 1.0
  %v560 = vsel %vm371, %v361, 1.0
  %v561 = vsel %vm371, %v362, 1.0
  %v562 = vld [vmem:[%s1] sm:$0xff]
  %v563 = vld [vmem:[%s1 + $0x8] sm:$0x3]
  %vm564 = vcmask 744448
  %v566 = vsel %vm564, %v562, 0
  %v569 = vsel %vm564, %v563, 0
  %vm571 = vcmask 1042432
  %v573 = vsel %vm571, %v558, 0
  %v576 = vsel %vm571, %v559, 0
  %v579 = vsel %vm571, %v560, 0
  %v582 = vsel %vm571, %v561, 0
  %584 = vmatpush.msra.mxu0 0.0
  %585 = vmatpush.msra.mxu0 0.0
  %586 = vmatpush.msra.mxu0 0.0
  %587 = vmatpush.msra.mxu0 0.0
  %588 = vmatpush.msra.mxu0 %v573
  %589 = vmatpush.msra.mxu0 %v355
  %590 = vmatpush.msra.mxu0 %v519
  %591 = vmatpush.msra.mxu0 %v554
  %592 = vmatpush.msra.mxu0 %v550
  %593 = vmatpush.msra.mxu0 %v546
  %594 = vmatpush.msra.mxu0 %v17
  %595 = vmatpush.msra.mxu0 %v435
  %596 = vmatpush.msra.mxu0 %v542
  %597 = vmatpush.msra.mxu0 %v538
  %598 = vmatpush.msra.mxu0 %v534
  %599 = vmatpush.msra.mxu0 %v61
  %600 = vmatmul.f32.gmra.mxu0 %v566
  %v601 = vpop.f32.mrf.mxu0
  %v602 = vadd.f32 0.0, %v601
  %603 = vmatmul.f32.gmra.mxu0 %v569
  %v604 = vpop.f32.mrf.mxu0
  %v605 = vadd.f32 0.0, %v604
  %606 = vdwg.mxu0
  %607 = vmatpush.msra.mxu0 0.0
  %608 = vmatpush.msra.mxu0 0.0
  %609 = vmatpush.msra.mxu0 0.0
  %610 = vmatpush.msra.mxu0 0.0
  %611 = vmatpush.msra.mxu0 %v576
  %612 = vmatpush.msra.mxu0 %v356
  %613 = vmatpush.msra.mxu0 %v521
  %614 = vmatpush.msra.mxu0 %v555
  %615 = vmatpush.msra.mxu0 %v551
  %616 = vmatpush.msra.mxu0 %v547
  %617 = vmatpush.msra.mxu0 %v18
  %618 = vmatpush.msra.mxu0 %v437
  %619 = vmatpush.msra.mxu0 %v543
  %620 = vmatpush.msra.mxu0 %v539
  %621 = vmatpush.msra.mxu0 %v535
  %622 = vmatpush.msra.mxu0 %v62
  %623 = vmatmul.f32.gmra.mxu0 %v566
  %v624 = vpop.f32.mrf.mxu0
  %v625 = vadd.f32 0.0, %v624
  %626 = vmatmul.f32.gmra.mxu0 %v569
  %v627 = vpop.f32.mrf.mxu0
  %v628 = vadd.f32 0.0, %v627
  %629 = vdwg.mxu0
  %630 = vmatpush.msra.mxu0 0.0
  %631 = vmatpush.msra.mxu0 0.0
  %632 = vmatpush.msra.mxu0 0.0
  %633 = vmatpush.msra.mxu0 0.0
  %634 = vmatpush.msra.mxu0 %v579
  %635 = vmatpush.msra.mxu0 %v357
  %636 = vmatpush.msra.mxu0 %v523
  %637 = vmatpush.msra.mxu0 %v556
  %638 = vmatpush.msra.mxu0 %v552
  %639 = vmatpush.msra.mxu0 %v548
  %640 = vmatpush.msra.mxu0 %v22
  %641 = vmatpush.msra.mxu0 %v439
  %642 = vmatpush.msra.mxu0 %v544
  %643 = vmatpush.msra.mxu0 %v540
  %644 = vmatpush.msra.mxu0 %v536
  %645 = vmatpush.msra.mxu0 %v63
  %646 = vmatmul.f32.gmra.mxu0 %v566
  %v647 = vpop.f32.mrf.mxu0
  %v648 = vadd.f32 0.0, %v647
  %649 = vmatmul.f32.gmra.mxu0 %v569
  %v650 = vpop.f32.mrf.mxu0
  %v651 = vadd.f32 0.0, %v650
  %652 = vdwg.mxu0
  %653 = vmatpush.msra.mxu0 0.0
  %654 = vmatpush.msra.mxu0 0.0
  %655 = vmatpush.msra.mxu0 0.0
  %656 = vmatpush.msra.mxu0 0.0
  %657 = vmatpush.msra.mxu0 %v582
  %658 = vmatpush.msra.mxu0 %v358
  %659 = vmatpush.msra.mxu0 %v525
  %660 = vmatpush.msra.mxu0 %v557
  %661 = vmatpush.msra.mxu0 %v553
  %662 = vmatpush.msra.mxu0 %v549
  %663 = vmatpush.msra.mxu0 %v23
  %664 = vmatpush.msra.mxu0 %v441
  %665 = vmatpush.msra.mxu0 %v545
  %666 = vmatpush.msra.mxu0 %v541
  %667 = vmatpush.msra.mxu0 %v537
  %668 = vmatpush.msra.mxu0 %v64
  %669 = vmatmul.f32.gmra.mxu0 %v566
  %v670 = vpop.f32.mrf.mxu0
  %v671 = vadd.f32 0.0, %v670
  %672 = vmatmul.f32.gmra.mxu0 %v569
  %v673 = vpop.f32.mrf.mxu0
  %v674 = vadd.f32 0.0, %v673
  %675 = vdwg.mxu0
  %v676 = vmax.f32 %v602, 0.0
  %v677 = vmax.f32 %v625, 0.0
  %v678 = vmax.f32 %v648, 0.0
  %v679 = vmax.f32 %v671, 0.0
  %v680 = vmax.f32 %v605, 0.0
  %v681 = vmax.f32 %v628, 0.0
  %v682 = vmax.f32 %v651, 0.0
  %v683 = vmax.f32 %v674, 0.0
  %684 = vrot.lane.b32.xlu0 %v676, 17
  %v685 = vpop.permute.xlu0 %684
  %686 = vrot.lane.b32.xlu0 %v680, 17
  %v687 = vpop.permute.xlu0 %686
  %688 = vrot.lane.b32.xlu0 %v677, 17
  %v689 = vpop.permute.xlu0 %688
  %690 = vrot.lane.b32.xlu0 %v681, 17
  %v691 = vpop.permute.xlu0 %690
  %692 = vrot.lane.b32.xlu0 %v678, 17
  %v693 = vpop.permute.xlu0 %692
  %694 = vrot.lane.b32.xlu0 %v682, 17
  %v695 = vpop.permute.xlu0 %694
  %696 = vrot.lane.b32.xlu0 %v679, 17
  %v697 = vpop.permute.xlu0 %696
  %698 = vrot.lane.b32.xlu0 %v683, 17
  %v699 = vpop.permute.xlu0 %698
  %v700 = vsel %vm44, %v693, %v697
  %v701 = vsel %vm44, %v695, %v699
  %v702 = vsel %vm44, %v689, %v693
  %v703 = vsel %vm44, %v691, %v695
  %v704 = vsel %vm44, %v685, %v689
  %v705 = vsel %vm44, %v687, %v691
  %v706 = vsel %vm44, %v697, %v685
  %v707 = vsel %vm44, %v699, %v687
  %v708 = vmul.f32 %v706, %v53
  %v709 = vmul.f32 %v704, %v54
  %v710 = vmul.f32 %v702, %v55
  %v711 = vmul.f32 %v700, %v56
  %v712 = vmul.f32 %v707, %v57
  %v713 = vmul.f32 %v705, %v58
  %v714 = vmul.f32 %v703, %v59
  %v715 = vmul.f32 %v701, %v60
  %716 = vrot.lane.b32.xlu0 %v676, 16
  %v717 = vpop.permute.xlu0 %716
  %718 = vrot.lane.b32.xlu0 %v680, 16
  %v719 = vpop.permute.xlu0 %718
  %720 = vrot.lane.b32.xlu0 %v677, 16
  %v721 = vpop.permute.xlu0 %720
  %722 = vrot.lane.b32.xlu0 %v681, 16
  %v723 = vpop.permute.xlu0 %722
  %724 = vrot.lane.b32.xlu0 %v678, 16
  %v725 = vpop.permute.xlu0 %724
  %726 = vrot.lane.b32.xlu0 %v682, 16
  %v727 = vpop.permute.xlu0 %726
  %728 = vrot.lane.b32.xlu0 %v679, 16
  %v729 = vpop.permute.xlu0 %728
  %730 = vrot.lane.b32.xlu0 %v683, 16
  %v731 = vpop.permute.xlu0 %730
  %v732 = vsel %vm85, %v725, %v729
  %v733 = vsel %vm85, %v727, %v731
  %v734 = vsel %vm85, %v721, %v725
  %v735 = vsel %vm85, %v723, %v727
  %v736 = vsel %vm85, %v717, %v721
  %v737 = vsel %vm85, %v719, %v723
  %v738 = vsel %vm85, %v729, %v717
  %v739 = vsel %vm85, %v731, %v719
  %v740 = vmul.f32 %v738, %v95
  %v741 = vmul.f32 %v736, %v96
  %v742 = vmul.f32 %v734, %v97
  %v743 = vmul.f32 %v732, %v98
  %v744 = vmul.f32 %v739, %v99
  %v745 = vmul.f32 %v737, %v100
  %v746 = vmul.f32 %v735, %v101
  %v747 = vmul.f32 %v733, %v102
  %748 = vrot.lane.b32.xlu0 %v676, 15
  %v749 = vpop.permute.xlu0 %748
  %750 = vrot.lane.b32.xlu0 %v680, 15
  %v751 = vpop.permute.xlu0 %750
  %752 = vrot.lane.b32.xlu0 %v677, 15
  %v753 = vpop.permute.xlu0 %752
  %754 = vrot.lane.b32.xlu0 %v681, 15
  %v755 = vpop.permute.xlu0 %754
  %756 = vrot.lane.b32.xlu0 %v678, 15
  %v757 = vpop.permute.xlu0 %756
  %758 = vrot.lane.b32.xlu0 %v682, 15
  %v759 = vpop.permute.xlu0 %758
  %760 = vrot.lane.b32.xlu0 %v679, 15
  %v761 = vpop.permute.xlu0 %760
  %762 = vrot.lane.b32.xlu0 %v683, 15
  %v763 = vpop.permute.xlu0 %762
  %v764 = vsel %vm127, %v757, %v761
  %v765 = vsel %vm127, %v759, %v763
  %v766 = vsel %vm127, %v753, %v757
  %v767 = vsel %vm127, %v755, %v759
  %v768 = vsel %vm127, %v749, %v753
  %v769 = vsel %vm127, %v751, %v755
  %v770 = vsel %vm127, %v761, %v749
  %v771 = vsel %vm127, %v763, %v751
  %v772 = vmul.f32 %v770, %v137
  %v773 = vmul.f32 %v768, %v138
  %v774 = vmul.f32 %v766, %v139
  %v775 = vmul.f32 %v764, %v140
  %v776 = vmul.f32 %v771, %v141
  %v777 = vmul.f32 %v769, %v142
  %v778 = vmul.f32 %v767, %v143
  %v779 = vmul.f32 %v765, %v144
  %780 = vrot.lane.b32.xlu0 %v676, 1
  %v781 = vpop.permute.xlu0 %780
  %782 = vrot.lane.b32.xlu0 %v680, 1
  %v783 = vpop.permute.xlu0 %782
  %784 = vrot.lane.b32.xlu0 %v677, 1
  %v785 = vpop.permute.xlu0 %784
  %786 = vrot.lane.b32.xlu0 %v681, 1
  %v787 = vpop.permute.xlu0 %786
  %788 = vrot.lane.b32.xlu0 %v678, 1
  %v789 = vpop.permute.xlu0 %788
  %790 = vrot.lane.b32.xlu0 %v682, 1
  %v791 = vpop.permute.xlu0 %790
  %792 = vrot.lane.b32.xlu0 %v679, 1
  %v793 = vpop.permute.xlu0 %792
  %794 = vrot.lane.b32.xlu0 %v683, 1
  %v795 = vpop.permute.xlu0 %794
  %v796 = vsel %vm169, %v789, %v793
  %v797 = vsel %vm169, %v791, %v795
  %v798 = vsel %vm169, %v785, %v789
  %v799 = vsel %vm169, %v787, %v791
  %v800 = vsel %vm169, %v781, %v785
  %v801 = vsel %vm169, %v783, %v787
  %v802 = vsel %vm169, %v793, %v781
  %v803 = vsel %vm169, %v795, %v783
  %v804 = vmul.f32 %v802, %v179
  %v805 = vmul.f32 %v800, %v180
  %v806 = vmul.f32 %v798, %v181
  %v807 = vmul.f32 %v796, %v182
  %v808 = vmul.f32 %v803, %v183
  %v809 = vmul.f32 %v801, %v184
  %v810 = vmul.f32 %v799, %v185
  %v811 = vmul.f32 %v797, %v186
  %812 = vrot.lane.b32.xlu0 %v676, 127
  %v813 = vpop.permute.xlu0 %812
  %814 = vrot.lane.b32.xlu0 %v680, 127
  %v815 = vpop.permute.xlu0 %814
  %816 = vrot.lane.b32.xlu0 %v677, 127
  %v817 = vpop.permute.xlu0 %816
  %818 = vrot.lane.b32.xlu0 %v681, 127
  %v819 = vpop.permute.xlu0 %818
  %820 = vrot.lane.b32.xlu0 %v678, 127
  %v821 = vpop.permute.xlu0 %820
  %822 = vrot.lane.b32.xlu0 %v682, 127
  %v823 = vpop.permute.xlu0 %822
  %824 = vrot.lane.b32.xlu0 %v679, 127
  %v825 = vpop.permute.xlu0 %824
  %826 = vrot.lane.b32.xlu0 %v683, 127
  %v827 = vpop.permute.xlu0 %826
  %v828 = vsel %vm211, %v821, %v825
  %v829 = vsel %vm211, %v823, %v827
  %v830 = vsel %vm211, %v817, %v821
  %v831 = vsel %vm211, %v819, %v823
  %v832 = vsel %vm211, %v813, %v817
  %v833 = vsel %vm211, %v815, %v819
  %v834 = vsel %vm211, %v825, %v813
  %v835 = vsel %vm211, %v827, %v815
  %v836 = vmul.f32 %v832, %v221
  %v837 = vmul.f32 %v830, %v222
  %v838 = vmul.f32 %v828, %v223
  %v839 = vmul.f32 %v834, %v224
  %v840 = vmul.f32 %v833, %v225
  %v841 = vmul.f32 %v831, %v226
  %v842 = vmul.f32 %v829, %v227
  %v843 = vmul.f32 %v835, %v228
  %844 = vrot.lane.b32.xlu0 %v676, 113
  %v845 = vpop.permute.xlu0 %844
  %846 = vrot.lane.b32.xlu0 %v680, 113
  %v847 = vpop.permute.xlu0 %846
  %848 = vrot.lane.b32.xlu0 %v677, 113
  %v849 = vpop.permute.xlu0 %848
  %850 = vrot.lane.b32.xlu0 %v681, 113
  %v851 = vpop.permute.xlu0 %850
  %852 = vrot.lane.b32.xlu0 %v678, 113
  %v853 = vpop.permute.xlu0 %852
  %854 = vrot.lane.b32.xlu0 %v682, 113
  %v855 = vpop.permute.xlu0 %854
  %856 = vrot.lane.b32.xlu0 %v679, 113
  %v857 = vpop.permute.xlu0 %856
  %858 = vrot.lane.b32.xlu0 %v683, 113
  %v859 = vpop.permute.xlu0 %858
  %v860 = vsel %vm253, %v853, %v857
  %v861 = vsel %vm253, %v855, %v859
  %v862 = vsel %vm253, %v849, %v853
  %v863 = vsel %vm253, %v851, %v855
  %v864 = vsel %vm253, %v845, %v849
  %v865 = vsel %vm253, %v847, %v851
  %v866 = vsel %vm253, %v857, %v845
  %v867 = vsel %vm253, %v859, %v847
  %v868 = vmul.f32 %v864, %v263
  %v869 = vmul.f32 %v862, %v264
  %v870 = vmul.f32 %v860, %v265
  %v871 = vmul.f32 %v866, %v266
  %v872 = vmul.f32 %v865, %v267
  %v873 = vmul.f32 %v863, %v268
  %v874 = vmul.f32 %v861, %v269
  %v875 = vmul.f32 %v867, %v270
  %876 = vrot.lane.b32.xlu0 %v676, 112
  %v877 = vpop.permute.xlu0 %876
  %878 = vrot.lane.b32.xlu0 %v680, 112
  %v879 = vpop.permute.xlu0 %878
  %880 = vrot.lane.b32.xlu0 %v677, 112
  %v881 = vpop.permute.xlu0 %880
  %882 = vrot.lane.b32.xlu0 %v681, 112
  %v883 = vpop.permute.xlu0 %882
  %884 = vrot.lane.b32.xlu0 %v678, 112
  %v885 = vpop.permute.xlu0 %884
  %886 = vrot.lane.b32.xlu0 %v682, 112
  %v887 = vpop.permute.xlu0 %886
  %888 = vrot.lane.b32.xlu0 %v679, 112
  %v889 = vpop.permute.xlu0 %888
  %890 = vrot.lane.b32.xlu0 %v683, 112
  %v891 = vpop.permute.xlu0 %890
  %v892 = vsel %vm295, %v885, %v889
  %v893 = vsel %vm295, %v887, %v891
  %v894 = vsel %vm295, %v881, %v885
  %v895 = vsel %vm295, %v883, %v887
  %v896 = vsel %vm295, %v877, %v881
  %v897 = vsel %vm295, %v879, %v883
  %v898 = vsel %vm295, %v889, %v877
  %v899 = vsel %vm295, %v891, %v879
  %v900 = vmul.f32 %v896, %v305
  %v901 = vmul.f32 %v894, %v306
  %v902 = vmul.f32 %v892, %v307
  %v903 = vmul.f32 %v898, %v308
  %v904 = vmul.f32 %v897, %v309
  %v905 = vmul.f32 %v895, %v310
  %v906 = vmul.f32 %v893, %v311
  %v907 = vmul.f32 %v899, %v312
  %908 = vrot.lane.b32.xlu0 %v676, 111
  %v909 = vpop.permute.xlu0 %908
  %910 = vrot.lane.b32.xlu0 %v680, 111
  %v911 = vpop.permute.xlu0 %910
  %912 = vrot.lane.b32.xlu0 %v677, 111
  %v913 = vpop.permute.xlu0 %912
  %914 = vrot.lane.b32.xlu0 %v681, 111
  %v915 = vpop.permute.xlu0 %914
  %916 = vrot.lane.b32.xlu0 %v678, 111
  %v917 = vpop.permute.xlu0 %916
  %918 = vrot.lane.b32.xlu0 %v682, 111
  %v919 = vpop.permute.xlu0 %918
  %920 = vrot.lane.b32.xlu0 %v679, 111
  %v921 = vpop.permute.xlu0 %920
  %922 = vrot.lane.b32.xlu0 %v683, 111
  %v923 = vpop.permute.xlu0 %922
  %v924 = vsel %vm337, %v917, %v921
  %v925 = vsel %vm337, %v919, %v923
  %v926 = vsel %vm337, %v913, %v917
  %v927 = vsel %vm337, %v915, %v919
  %v928 = vsel %vm337, %v909, %v913
  %v929 = vsel %vm337, %v911, %v915
  %v930 = vsel %vm337, %v921, %v909
  %v931 = vsel %vm337, %v923, %v911
  %v932 = vmul.f32 %v928, %v347
  %v933 = vmul.f32 %v926, %v348
  %v934 = vmul.f32 %v924, %v349
  %v935 = vmul.f32 %v930, %v350
  %v936 = vmul.f32 %v929, %v351
  %v937 = vmul.f32 %v927, %v352
  %v938 = vmul.f32 %v925, %v353
  %v939 = vmul.f32 %v931, %v354
  %v948 = vrot.slane %v740, 6
  %v949 = vrot.slane %v741, 6
  %v950 = vrot.slane %v742, 6
  %v951 = vrot.slane %v743, 6
  %v952 = vrot.slane %v744, 6
  %v953 = vsel %vm371, %v948, %v952
  %v954 = vrot.slane %v745, 6
  %v955 = vsel %vm371, %v949, %v954
  %v956 = vrot.slane %v746, 6
  %v957 = vsel %vm371, %v950, %v956
  %v958 = vrot.slane %v747, 6
  %v959 = vsel %vm371, %v951, %v958
  %v976 = vrot.slane %v772, 4
  %v977 = vrot.slane %v773, 4
  %v978 = vrot.slane %v774, 4
  %v979 = vrot.slane %v775, 4
  %v980 = vrot.slane %v776, 4
  %v981 = vsel %vm400, %v976, %v980
  %v982 = vrot.slane %v777, 4
  %v983 = vsel %vm400, %v977, %v982
  %v984 = vrot.slane %v778, 4
  %v985 = vsel %vm400, %v978, %v984
  %v986 = vrot.slane %v779, 4
  %v987 = vsel %vm400, %v979, %v986
  %v1004 = vrot.slane %v804, 2
  %v1005 = vrot.slane %v805, 2
  %v1006 = vrot.slane %v806, 2
  %v1007 = vrot.slane %v807, 2
  %v1008 = vrot.slane %v808, 2
  %v1009 = vsel %vm429, %v1004, %v1008
  %v1010 = vrot.slane %v809, 2
  %v1011 = vsel %vm429, %v1005, %v1010
  %v1012 = vrot.slane %v810, 2
  %v1013 = vsel %vm429, %v1006, %v1012
  %v1014 = vrot.slane %v811, 2
  %v1015 = vsel %vm429, %v1007, %v1014
  %v1032 = vrot.slane %v836, 6
  %v1033 = vrot.slane %v837, 6
  %v1034 = vrot.slane %v838, 6
  %v1035 = vrot.slane %v839, 6
  %v1036 = vrot.slane %v840, 6
  %v1037 = vsel %vm371, %v1032, %v1036
  %v1038 = vrot.slane %v841, 6
  %v1039 = vsel %vm371, %v1033, %v1038
  %v1040 = vrot.slane %v842, 6
  %v1041 = vsel %vm371, %v1034, %v1040
  %v1042 = vrot.slane %v843, 6
  %v1043 = vsel %vm371, %v1035, %v1042
  %v1060 = vrot.slane %v868, 4
  %v1061 = vrot.slane %v869, 4
  %v1062 = vrot.slane %v870, 4
  %v1063 = vrot.slane %v871, 4
  %v1064 = vrot.slane %v872, 4
  %v1065 = vsel %vm400, %v1060, %v1064
  %v1066 = vrot.slane %v873, 4
  %v1067 = vsel %vm400, %v1061, %v1066
  %v1068 = vrot.slane %v874, 4
  %v1069 = vsel %vm400, %v1062, %v1068
  %v1070 = vrot.slane %v875, 4
  %v1071 = vsel %vm400, %v1063, %v1070
  %v1088 = vrot.slane %v900, 2
  %v1089 = vrot.slane %v901, 2
  %v1090 = vrot.slane %v902, 2
  %v1091 = vrot.slane %v903, 2
  %v1092 = vrot.slane %v904, 2
  %v1093 = vsel %vm429, %v1088, %v1092
  %v1094 = vrot.slane %v905, 2
  %v1095 = vsel %vm429, %v1089, %v1094
  %v1096 = vrot.slane %v906, 2
  %v1097 = vsel %vm429, %v1090, %v1096
  %v1098 = vrot.slane %v907, 2
  %v1099 = vsel %vm429, %v1091, %v1098
  %v1108 = vsel %vm371, %v712, %v948
  %v1109 = vsel %vm371, %v713, %v949
  %v1110 = vsel %vm371, %v714, %v950
  %v1111 = vsel %vm371, %v715, %v951
  %v1112 = vsel %vm400, %v953, %v976
  %v1113 = vsel %vm400, %v955, %v977
  %v1114 = vsel %vm400, %v957, %v978
  %v1115 = vsel %vm400, %v959, %v979
  %v1116 = vsel %vm429, %v981, %v1004
  %v1117 = vsel %vm429, %v983, %v1005
  %v1118 = vsel %vm429, %v985, %v1006
  %v1119 = vsel %vm429, %v987, %v1007
  %v1120 = vsel %vm371, %v680, %v1032
  %v1121 = vsel %vm371, %v681, %v1033
  %v1122 = vsel %vm371, %v682, %v1034
  %v1123 = vsel %vm371, %v683, %v1035
  %v1124 = vsel %vm400, %v1037, %v1060
  %v1125 = vsel %vm400, %v1039, %v1061
  %v1126 = vsel %vm400, %v1041, %v1062
  %v1127 = vsel %vm400, %v1043, %v1063
  %v1128 = vsel %vm429, %v1065, %v1088
  %v1129 = vsel %vm429, %v1067, %v1089
  %v1130 = vsel %vm429, %v1069, %v1090
  %v1131 = vsel %vm429, %v1071, %v1091
  %v1132 = vsel %vm371, %v936, 1.0
  %v1133 = vsel %vm371, %v937, 1.0
  %v1134 = vsel %vm371, %v938, 1.0
  %v1135 = vsel %vm371, %v939, 1.0
  %v1136 = vld [vmem:[%s2] sm:$0xff]
  %v1137 = vld [vmem:[%s2 + $0x8] sm:$0x3]
  %v1139 = vsel %vm564, %v1136, 0
  %v1142 = vsel %vm564, %v1137, 0
  %v1145 = vsel %vm571, %v1132, 0
  %v1148 = vsel %vm571, %v1133, 0
  %v1151 = vsel %vm571, %v1134, 0
  %v1154 = vsel %vm571, %v1135, 0
  %1156 = vmatpush.msra.mxu0 0.0
  %1157 = vmatpush.msra.mxu0 0.0
  %1158 = vmatpush.msra.mxu0 0.0
  %1159 = vmatpush.msra.mxu0 0.0
  %1160 = vmatpush.msra.mxu0 %v1145
  %1161 = vmatpush.msra.mxu0 %v932
  %1162 = vmatpush.msra.mxu0 %v1093
  %1163 = vmatpush.msra.mxu0 %v1128
  %1164 = vmatpush.msra.mxu0 %v1124
  %1165 = vmatpush.msra.mxu0 %v1120
  %1166 = vmatpush.msra.mxu0 %v676
  %1167 = vmatpush.msra.mxu0 %v1009
  %1168 = vmatpush.msra.mxu0 %v1116
  %1169 = vmatpush.msra.mxu0 %v1112
  %1170 = vmatpush.msra.mxu0 %v1108
  %1171 = vmatpush.msra.mxu0 %v708
  %1172 = vmatmul.f32.gmra.mxu0 %v1139
  %v1173 = vpop.f32.mrf.mxu0
  %v1174 = vadd.f32 0.0, %v1173
  %1175 = vmatmul.f32.gmra.mxu0 %v1142
  %v1176 = vpop.f32.mrf.mxu0
  %v1177 = vadd.f32 0.0, %v1176
  %1178 = vdwg.mxu0
  %1179 = vmatpush.msra.mxu0 0.0
  %1180 = vmatpush.msra.mxu0 0.0
  %1181 = vmatpush.msra.mxu0 0.0
  %1182 = vmatpush.msra.mxu0 0.0
  %1183 = vmatpush.msra.mxu0 %v1148
  %1184 = vmatpush.msra.mxu0 %v933
  %1185 = vmatpush.msra.mxu0 %v1095
  %1186 = vmatpush.msra.mxu0 %v1129
  %1187 = vmatpush.msra.mxu0 %v1125
  %1188 = vmatpush.msra.mxu0 %v1121
  %1189 = vmatpush.msra.mxu0 %v677
  %1190 = vmatpush.msra.mxu0 %v1011
  %1191 = vmatpush.msra.mxu0 %v1117
  %1192 = vmatpush.msra.mxu0 %v1113
  %1193 = vmatpush.msra.mxu0 %v1109
  %1194 = vmatpush.msra.mxu0 %v709
  %1195 = vmatmul.f32.gmra.mxu0 %v1139
  %v1196 = vpop.f32.mrf.mxu0
  %v1197 = vadd.f32 0.0, %v1196
  %1198 = vmatmul.f32.gmra.mxu0 %v1142
  %v1199 = vpop.f32.mrf.mxu0
  %v1200 = vadd.f32 0.0, %v1199
  %1201 = vdwg.mxu0
  %1202 = vmatpush.msra.mxu0 0.0
  %1203 = vmatpush.msra.mxu0 0.0
  %1204 = vmatpush.msra.mxu0 0.0
  %1205 = vmatpush.msra.mxu0 0.0
  %1206 = vmatpush.msra.mxu0 %v1151
  %1207 = vmatpush.msra.mxu0 %v934
  %1208 = vmatpush.msra.mxu0 %v1097
  %1209 = vmatpush.msra.mxu0 %v1130
  %1210 = vmatpush.msra.mxu0 %v1126
  %1211 = vmatpush.msra.mxu0 %v1122
  %1212 = vmatpush.msra.mxu0 %v678
  %1213 = vmatpush.msra.mxu0 %v1013
  %1214 = vmatpush.msra.mxu0 %v1118
  %1215 = vmatpush.msra.mxu0 %v1114
  %1216 = vmatpush.msra.mxu0 %v1110
  %1217 = vmatpush.msra.mxu0 %v710
  %1218 = vmatmul.f32.gmra.mxu0 %v1139
  %v1219 = vpop.f32.mrf.mxu0
  %v1220 = vadd.f32 0.0, %v1219
  %1221 = vmatmul.f32.gmra.mxu0 %v1142
  %v1222 = vpop.f32.mrf.mxu0
  %v1223 = vadd.f32 0.0, %v1222
  %1224 = vdwg.mxu0
  %1225 = vmatpush.msra.mxu0 0.0
  %1226 = vmatpush.msra.mxu0 0.0
  %1227 = vmatpush.msra.mxu0 0.0
  %1228 = vmatpush.msra.mxu0 0.0
  %1229 = vmatpush.msra.mxu0 %v1154
  %1230 = vmatpush.msra.mxu0 %v935
  %1231 = vmatpush.msra.mxu0 %v1099
  %1232 = vmatpush.msra.mxu0 %v1131
  %1233 = vmatpush.msra.mxu0 %v1127
  %1234 = vmatpush.msra.mxu0 %v1123
  %1235 = vmatpush.msra.mxu0 %v679
  %1236 = vmatpush.msra.mxu0 %v1015
  %1237 = vmatpush.msra.mxu0 %v1119
  %1238 = vmatpush.msra.mxu0 %v1115
  %1239 = vmatpush.msra.mxu0 %v1111
  %1240 = vmatpush.msra.mxu0 %v711
  %1241 = vmatmul.f32.gmra.mxu0 %v1139
  %v1242 = vpop.f32.mrf.mxu0
  %v1243 = vadd.f32 0.0, %v1242
  %1244 = vmatmul.f32.gmra.mxu0 %v1142
  %v1245 = vpop.f32.mrf.mxu0
  %v1246 = vadd.f32 0.0, %v1245
  %1247 = vdwg.mxu0
  %v1248 = vmax.f32 %v1174, 0.0
  %v1249 = vmax.f32 %v1197, 0.0
  %v1250 = vmax.f32 %v1220, 0.0
  %v1251 = vmax.f32 %v1243, 0.0
  %v1252 = vmax.f32 %v1177, 0.0
  %v1253 = vmax.f32 %v1200, 0.0
  %v1254 = vmax.f32 %v1223, 0.0
  %v1255 = vmax.f32 %v1246, 0.0
  %1256 = vst [vmem:[%s4] sm:$0xff] %v1248
  %1257 = vst [vmem:[%s4 + $0x8] sm:$0xff] %v1249
  %1258 = vst [vmem:[%s4 + $0x10] sm:$0x3] %v1252
  %1259 = vst [vmem:[%s4 + $0x18] sm:$0x3] %v1253
  %s1260 = scalar_lea.vmem %s4, 32
  %1261 = vst [vmem:[%s1260] sm:$0xff] %v1250
  %1262 = vst [vmem:[%s1260 + $0x8] sm:$0xff] %v1251
  %1263 = vst [vmem:[%s1260 + $0x10] sm:$0x3] %v1254
  %1264 = vst [vmem:[%s1260 + $0x18] sm:$0x3] %v1255
  // Predicated region
  $region18: #{model_forward.1} parent=0 // pred_check
    _
  $region19: #{model_forward.1} parent=0 // pred_check_branch
    %1266 = sbr.rel (0) target = $region21
  $region20: #{model_forward.1} parent=0 // pred_region
    _
  $region21: #{model_forward.1} parent=0 // pred_fallthru
    _
  // Predicated region
  $region22: #{model_forward.1} parent=0 // pred_check
    _
  $region23: #{model_forward.1} parent=0 // pred_check_branch
    %1268 = sbr.rel (0) target = $region25
  $region24: #{model_forward.1} parent=0 // pred_region
    _
  $region25: #{model_forward.1} parent=0 // pred_fallthru
    _

</llo_original>
